<compile_context>
chip_gen: v7x
topology: tpu7x:2x2x1
jax: 0.10.0
libtpu: 0.0.40
codegen_flags: <defaults>
</compile_context>

<pallas_src>
import functools

import jax
import jax.numpy as jnp
from jax.experimental import pallas as pl
from jax.experimental.pallas import tpu as pltpu


def _focal_loss_kernel(logits_ref, targets_ref, out_ref, acc_ref, *,
                       alpha, gamma, tile_n, n_rows, tiles_per_split):
    # logits_ref : (TILE_N, C) input-dtype tile in VMEM
    # targets_ref: (TILE_N, 1) int32 tile in VMEM
    # out_ref    : (1, 1) f32 in SMEM (per-split partial sum)
    # acc_ref    : (1, 1) f32 VMEM scratch accumulator
    s = pl.program_id(0)   # split index   ("parallel" axis, one per TensorCore)
    i = pl.program_id(1)   # tile-in-split ("arbitrary" reduction axis)

    @pl.when(i == 0)
    def _():
        acc_ref[...] = jnp.zeros_like(acc_ref)

    x = logits_ref[...]                                           # (T, C) bf16/f32
    t = targets_ref[...]                                          # (T, 1) int32

    # Row max on the input dtype (exact: max returns an existing input value);
    # the f32 widening is folded into the subtraction feeding exp() instead of
    # materializing a full f32 copy of the tile up front.
    m = jnp.max(x, axis=-1, keepdims=True)                        # (T, 1)
    xm = x.astype(jnp.float32) - m.astype(jnp.float32)            # (T, C) f32
    denom = jnp.sum(jnp.exp(xm), axis=-1, keepdims=True)          # (T, 1)

    # Target-class value of (x - m): fused select-reduce, no one-hot temp.
    col = jax.lax.broadcasted_iota(jnp.int32, xm.shape, 1)        # (T, C)
    xm_t = jnp.sum(jnp.where(col == t, xm, 0.0), axis=-1, keepdims=True)

    ce = jnp.log(denom) - xm_t                                    # per-sample CE
    pt = jnp.exp(-ce)
    one_minus_pt = 1.0 - pt

    g = float(gamma)
    if g >= 0 and g == int(g):           # small integer gamma -> repeated mult
        w = jnp.ones_like(one_minus_pt)
        for _ in range(int(g)):
            w = w * one_minus_pt
    else:                                 # non-integer gamma -> pow (EUP path)
        w = one_minus_pt ** g
    focal = alpha * w * ce                                        # (T, 1)

    # Mask rows past the logical end of the batch (remainder / padded tiles).
    tile_global = s * tiles_per_split + i
    row_ids = tile_global * tile_n + jax.lax.broadcasted_iota(
        jnp.int32, (tile_n, 1), 0)
    focal = jnp.where(row_ids < n_rows, focal, 0.0)

    # NOTE: single-scalar f32 accumulation; with the larger byte-sized tiles
    # there are few accumulation steps, so rounding growth is negligible.
    acc_ref[...] += jnp.sum(focal, keepdims=True)                 # (1, 1)

    @pl.when(i == pl.num_programs(1) - 1)
    def _():
        out_ref[0, 0] = jnp.sum(acc_ref[...])


def _num_tensorcores():
    """Best-effort TensorCores-per-chip count (v5e/v6e: 1, v7x: 2)."""
    try:
        info = pltpu.get_tpu_info()
        for attr in ("num_cores", "core_count", "num_tensorcores",
                     "tensorcore_count"):
            v = getattr(info, attr, None)
            if isinstance(v, int) and v >= 1:
                return v
    except Exception:
        pass
    try:
        kind = jax.devices()[0].device_kind.lower()
        if "v7" in kind or "7x" in kind:
            return 2
    except Exception:
        pass
    return 1


def _pick_tile_n(n, c, itemsize):
    """Rows per tile.

    Per-row VMEM footprint:
      * double-buffered input DMA: 2 * C * itemsize
      * ~3 live f32 (T, C) temporaries in the kernel (widened x-m, exp(x-m),
        the select feeding the target reduce): 3 * C * 4
    Aim each logits DMA buffer at ~4 MiB (>=85% of HBM roofline) while keeping
    the estimated total footprint under ~24 MiB -- safe headroom on every
    generation, including v7x's 64 MiB physical VMEM.
    """
    per_row = 2 * c * itemsize + 3 * c * 4
    total_budget = 24 * 1024 * 1024
    dma_target = 4 * 1024 * 1024
    max_rows_total = max(8, total_budget // max(1, per_row))
    max_rows_dma = max(8, dma_target // max(1, c * itemsize))
    tile = min(n, max_rows_total, max_rows_dma)
    if n >= 8:
        tile = max(8, (tile // 8) * 8)   # sublane (8, 128) alignment
    else:
        tile = n                         # block == full dim is always legal
    return tile


def focal_loss(logits, targets, alpha=1.0, gamma=2, tile_n=None):
    """Mean focal loss. logits: (N, C) f32/bf16, targets: (N,) int."""
    n, c = logits.shape
    targets_2d = targets.astype(jnp.int32).reshape(n, 1)

    if tile_n is None:
        tile_n = _pick_tile_n(n, c, logits.dtype.itemsize)
    total_tiles = pl.cdiv(n, tile_n)

    # One split per TensorCore; 1-TC chips (v5e/v6e) get no split -> no
    # redundant clamped-tile DMA, no extra epilogue.
    num_cores = _num_tensorcores()
    num_splits = num_cores if (num_cores > 1 and total_tiles >= num_cores) else 1
    tiles_per_split = pl.cdiv(total_tiles, num_splits)

    def block_map(s, i):
        # Clamp so padded tiles (odd tile count split across cores) still DMA
        # in-bounds data; their rows are masked out inside the kernel.
        return (jnp.minimum(s * tiles_per_split + i, total_tiles - 1), 0)

    kernel = functools.partial(
        _focal_loss_kernel, alpha=float(alpha), gamma=gamma,
        tile_n=tile_n, n_rows=n, tiles_per_split=tiles_per_split)

    # Scoped-VMEM request sized from the real footprint (input double-buffers
    # + in-kernel f32 temporaries), clamped well under v7x's 64 MiB physical.
    per_row = 2 * c * logits.dtype.itemsize + 3 * c * 4
    est_bytes = tile_n * per_row + (1 << 20)
    vmem_limit = int(min(max(2 * est_bytes, 16 << 20), 40 << 20))

    # TODO(synk): on v7x, plain "parallel" may not guarantee the split axis is
    # sharded across both TensorCores; pltpu.CORE_PARALLEL (or pl.core_map over
    # create_tensorcore_mesh) is the guaranteed route if profiling shows it
    # running serially.
    # TODO(synk): vocab-scale C needs a C-tiled online-softmax path (running
    # max / denominator over a class-axis grid) to keep tile_n large within
    # VMEM; not needed at these class counts.
    partials = pl.pallas_call(
        kernel,
        out_shape=jax.ShapeDtypeStruct((num_splits, 1), jnp.float32),
        grid_spec=pltpu.PrefetchScalarGridSpec(
            num_scalar_prefetch=0,
            grid=(num_splits, tiles_per_split),
            in_specs=[
                pl.BlockSpec((tile_n, c), block_map),   # logits tile
                pl.BlockSpec((tile_n, 1), block_map),   # targets tile
            ],
            out_specs=pl.BlockSpec((1, 1), lambda s, i: (s, 0),
                                   memory_space=pltpu.SMEM),
            scratch_shapes=[pltpu.VMEM((1, 1), jnp.float32)],
        ),
        compiler_params=pltpu.CompilerParams(
            dimension_semantics=("parallel", "arbitrary"),
            vmem_limit_bytes=vmem_limit),
    )(logits, targets_2d)

    return jnp.sum(partials) * (1.0 / n)


def _focal_loss_ref(logits, targets, alpha=1.0, gamma=2):
    # Pure-JAX reference mirroring F.cross_entropy(reduction='none') + focal.
    logp = jax.nn.log_softmax(logits.astype(jnp.float32), axis=-1)
    ce = -jnp.take_along_axis(logp, targets[:, None].astype(jnp.int32), axis=-1)[:, 0]
    pt = jnp.exp(-ce)
    return jnp.mean(alpha * (1.0 - pt) ** gamma * ce)


if __name__ == "__main__":
    key = jax.random.PRNGKey(0)
    k1, k2, k3, k4 = jax.random.split(key, 4)

    # Small shape matching F.cross_entropy((N, C), (N,)).
    N, C = 8, 32
    logits = jax.random.normal(k1, (N, C), dtype=jnp.float32)
    targets = jax.random.randint(k2, (N,), 0, C, dtype=jnp.int32)
    loss = jax.block_until_ready(focal_loss(logits, targets, alpha=1.0, gamma=2))
    ref = _focal_loss_ref(logits, targets, alpha=1.0, gamma=2)
    assert jnp.allclose(loss, ref, rtol=1e-5, atol=1e-6), (loss, ref)

    # Exercise tiling, remainder masking and (when >1 TC) the core split
    # (N not a multiple of the tile, odd number of tiles).
    N2, C2 = 50, 32
    logits2 = jax.random.normal(k3, (N2, C2), dtype=jnp.float32)
    targets2 = jax.random.randint(k4, (N2,), 0, C2, dtype=jnp.int32)
    loss2 = jax.block_until_ready(focal_loss(logits2, targets2, tile_n=8))
    ref2 = _focal_loss_ref(logits2, targets2)
    assert jnp.allclose(loss2, ref2, rtol=1e-5, atol=1e-6), (loss2, ref2)

    # TODO(synk): out-of-range target indices silently contribute ce = logsumexp
    # (no error / no ignore_index), unlike PyTorch's F.cross_entropy.
    print("KERNEL_OK")
</pallas_src>

<mosaic_0001>
module attributes {stable_mosaic.version = 11 : i64} {
  func.func @_focal_loss_kernel(%arg0: i32, %arg1: i32, %arg2: memref<8x32xf32, #tpu.memory_space<vmem>>, %arg3: memref<8x1xi32, #tpu.memory_space<vmem>>, %arg4: memref<1x1xf32, #tpu.memory_space<smem>>, %arg5: memref<1x1xf32, #tpu.memory_space<vmem>>) attributes {dimension_semantics = [#tpu.dimension_semantics<parallel>, #tpu.dimension_semantics<arbitrary>], iteration_bounds = array<i64: 1, 1>, scalar_prefetch = 0 : i64, scratch_operands = 1 : i64, tpu.core_type = #tpu.core_type<tc>, window_params = [{transform_indices = @transform_0, window_bounds = array<i64: 8, 32>}, {transform_indices = @transform_1, window_bounds = array<i64: 8, 1>}, {transform_indices = @transform_2, window_bounds = array<i64: 1, 1>}]} {
    %c0_i32 = arith.constant 0 : i32
    %0 = arith.cmpi eq, %arg1, %c0_i32 : i32
    %1 = arith.extui %0 : i1 to i32
    %c0_i32_0 = arith.constant 0 : i32
    %2 = arith.cmpi ne, %1, %c0_i32_0 : i32
    scf.if %2 {
      %cst_20 = arith.constant 0.000000e+00 : f32
      %53 = vector.broadcast %cst_20 : f32 to vector<1x1xf32>
      %c0_21 = arith.constant 0 : index
      %c0_22 = arith.constant 0 : index
      %54 = vector.load %arg5[%c0_21, %c0_22] : memref<1x1xf32, #tpu.memory_space<vmem>>, vector<1x1xf32>
      tpu.vector_store %arg5[%c0_21, %c0_22], %53 {strides = array<i32>} : memref<1x1xf32, #tpu.memory_space<vmem>>, vector<1x1xf32>,
    } else {
    }
    %c0 = arith.constant 0 : index
    %c0_1 = arith.constant 0 : index
    %3 = vector.load %arg2[%c0, %c0_1] : memref<8x32xf32, #tpu.memory_space<vmem>>, vector<8x32xf32>
    %c0_2 = arith.constant 0 : index
    %c0_3 = arith.constant 0 : index
    %4 = vector.load %arg3[%c0_2, %c0_3] : memref<8x1xi32, #tpu.memory_space<vmem>>, vector<8x1xi32>
    %cst = arith.constant dense<0xFF800000> : vector<8xf32>
    %5 = vector.multi_reduction <maximumf>, %3, %cst [1] : vector<8x32xf32> to vector<8xf32>
    %6 = vector.shape_cast %5 : vector<8xf32> to vector<8x1xf32>
    %7 = vector.broadcast %6 : vector<8x1xf32> to vector<8x32xf32>
    %8 = arith.subf %3, %7 : vector<8x32xf32>
    %9 = math.exp %8 : vector<8x32xf32>
    %cst_4 = arith.constant dense<0.000000e+00> : vector<8xf32>
    %10 = vector.multi_reduction <add>, %9, %cst_4 [1] : vector<8x32xf32> to vector<8xf32>
    %11 = vector.shape_cast %10 : vector<8xf32> to vector<8x1xf32>
    %12 = tpu.iota {dimensions = array<i32: 1>} : vector<8x32xi32>
    %13 = vector.broadcast %4 : vector<8x1xi32> to vector<8x32xi32>
    %14 = arith.cmpi eq, %12, %13 : vector<8x32xi32>
    %cst_5 = arith.constant 0.000000e+00 : f32
    %15 = vector.broadcast %cst_5 : f32 to vector<8x32xf32>
    %16 = arith.select %14, %8, %15 : vector<8x32xi1>, vector<8x32xf32>
    %cst_6 = arith.constant dense<0.000000e+00> : vector<8xf32>
    %17 = vector.multi_reduction <add>, %16, %cst_6 [1] : vector<8x32xf32> to vector<8xf32>
    %18 = vector.shape_cast %17 : vector<8xf32> to vector<8x1xf32>
    %19 = math.log %11 : vector<8x1xf32>
    %20 = arith.subf %19, %18 : vector<8x1xf32>
    %cst_7 = arith.constant 0.000000e+00 : f32
    %21 = vector.broadcast %cst_7 : f32 to vector<8x1xf32>
    %22 = arith.subf %21, %20 : vector<8x1xf32>
    %23 = math.exp %22 : vector<8x1xf32>
    %cst_8 = arith.constant 1.000000e+00 : f32
    %24 = vector.broadcast %cst_8 : f32 to vector<8x1xf32>
    %25 = arith.subf %24, %23 : vector<8x1xf32>
    %cst_9 = arith.constant 1.000000e+00 : f32
    %26 = vector.broadcast %cst_9 : f32 to vector<8x1xf32>
    %27 = arith.mulf %26, %25 : vector<8x1xf32>
    %28 = arith.mulf %27, %25 : vector<8x1xf32>
    %cst_10 = arith.constant 1.000000e+00 : f32
    %29 = vector.broadcast %cst_10 : f32 to vector<8x1xf32>
    %30 = arith.mulf %29, %28 : vector<8x1xf32>
    %31 = arith.mulf %30, %20 : vector<8x1xf32>
    %c1_i32 = arith.constant 1 : i32
    %32 = arith.muli %arg0, %c1_i32 : i32
    %33 = arith.addi %32, %arg1 : i32
    %c8_i32 = arith.constant 8 : i32
    %34 = arith.muli %33, %c8_i32 : i32
    %35 = tpu.iota {dimensions = array<i32: 0>} : vector<8x1xi32>
    %36 = vector.broadcast %34 : i32 to vector<8x1xi32>
    %37 = arith.addi %36, %35 : vector<8x1xi32>
    %c8_i32_11 = arith.constant 8 : i32
    %38 = vector.broadcast %c8_i32_11 : i32 to vector<8x1xi32>
    %39 = arith.cmpi slt, %37, %38 : vector<8x1xi32>
    %cst_12 = arith.constant 0.000000e+00 : f32
    %40 = vector.broadcast %cst_12 : f32 to vector<8x1xf32>
    %41 = arith.select %39, %31, %40 : vector<8x1xi1>, vector<8x1xf32>
    %c0_13 = arith.constant 0 : index
    %c0_14 = arith.constant 0 : index
    %42 = vector.load %arg5[%c0_13, %c0_14] : memref<1x1xf32, #tpu.memory_space<vmem>>, vector<1x1xf32>
    %43 = vector.shape_cast %41 : vector<8x1xf32> to vector<1x8x1xf32>
    %cst_15 = arith.constant dense<0.000000e+00> : vector<1xf32>
    %44 = vector.multi_reduction <add>, %43, %cst_15 [1, 2] : vector<1x8x1xf32> to vector<1xf32>
    %45 = vector.shape_cast %44 : vector<1xf32> to vector<1x1x1xf32>
    %46 = vector.extract %45[0, 0, 0] : f32 from vector<1x1x1xf32>
    %47 = vector.broadcast %46 : f32 to vector<1x1xf32>
    %48 = arith.addf %42, %47 : vector<1x1xf32>
    %c0_16 = arith.constant 0 : index
    %c0_17 = arith.constant 0 : index
    %49 = vector.load %arg5[%c0_16, %c0_17] : memref<1x1xf32, #tpu.memory_space<vmem>>, vector<1x1xf32>
    tpu.vector_store %arg5[%c0_16, %c0_17], %48 {strides = array<i32>} : memref<1x1xf32, #tpu.memory_space<vmem>>, vector<1x1xf32>,
    %c0_i32_18 = arith.constant 0 : i32
    %50 = arith.cmpi eq, %arg1, %c0_i32_18 : i32
    %51 = arith.extui %50 : i1 to i32
    %c0_i32_19 = arith.constant 0 : i32
    %52 = arith.cmpi ne, %51, %c0_i32_19 : i32
    scf.if %52 {
      %c0_20 = arith.constant 0 : index
      %c0_21 = arith.constant 0 : index
      %53 = vector.load %arg5[%c0_20, %c0_21] : memref<1x1xf32, #tpu.memory_space<vmem>>, vector<1x1xf32>
      %54 = vector.shape_cast %53 : vector<1x1xf32> to vector<1x1x1xf32>
      %cst_22 = arith.constant dense<0.000000e+00> : vector<1xf32>
      %55 = vector.multi_reduction <add>, %54, %cst_22 [1, 2] : vector<1x1x1xf32> to vector<1xf32>
      %56 = vector.shape_cast %55 : vector<1xf32> to vector<1x1x1xf32>
      %57 = vector.extract %56[0, 0, 0] : f32 from vector<1x1x1xf32>
      %c0_23 = arith.constant 0 : index
      %c0_24 = arith.constant 0 : index
      %58 = memref.load %arg4[%c0_23, %c0_24] : memref<1x1xf32, #tpu.memory_space<smem>>
      memref.store %57, %arg4[%c0_23, %c0_24] : memref<1x1xf32, #tpu.memory_space<smem>>
    } else {
    }
    return
  }
  func.func @transform_0(%arg0: i32, %arg1: i32) -> (i32, i32) {
    %c1_i32 = arith.constant 1 : i32
    %0 = arith.muli %arg0, %c1_i32 : i32
    %1 = arith.addi %0, %arg1 : i32
    %c0_i32 = arith.constant 0 : i32
    %2 = arith.minsi %1, %c0_i32 : i32
    %c0_i32_0 = arith.constant 0 : i32
    %c0_i32_1 = arith.constant 0 : i32
    return %2, %c0_i32_0 : i32, i32
  }
  func.func @transform_1(%arg0: i32, %arg1: i32) -> (i32, i32) {
    %c1_i32 = arith.constant 1 : i32
    %0 = arith.muli %arg0, %c1_i32 : i32
    %1 = arith.addi %0, %arg1 : i32
    %c0_i32 = arith.constant 0 : i32
    %2 = arith.minsi %1, %c0_i32 : i32
    %c0_i32_0 = arith.constant 0 : i32
    %c0_i32_1 = arith.constant 0 : i32
    return %2, %c0_i32_0 : i32, i32
  }
  func.func @transform_2(%arg0: i32, %arg1: i32) -> (i32, i32) {
    %c0_i32 = arith.constant 0 : i32
    %c0_i32_0 = arith.constant 0 : i32
    return %arg0, %c0_i32 : i32, i32
  }
}

</mosaic_0001>

<llo_original>
// kernel: tpu_custom_call.1
$region0: #{tpu_custom_call.1}
  #allocation0 [shape = 'u32[]', space=smem, size = 0x4, offset = 0x4, fixed_abs, tag = 'smem constant byte address 0x4 - core index']
  #allocation1 [shape = 'u32[144,128]{1,0:T(1,128)}', space=vmem, size = 0x12000, scoped, tag = 'internal scratch']
  #allocation2 [shape = 'f32[1,1]{1,0:T(1,128)}', space=vmem, size = 0x200, scoped, tag = 'scratch operand']
  %s0 = inlined_call_operand.vmem [shape: f32[8,32], index: 0, kind: input, shape index: {}]
  %s1 = inlined_call_operand.vmem [shape: s32[8,1], index: 1, kind: input, shape index: {}]
  %s2 = inlined_call_operand.hbm [shape: f32[1,1], index: 2, kind: output, shape index: {}]
  %s3 = sld [smem:[#allocation0]]
  $region26: #{tpu_custom_call.1} parent=0
    _
  %s5 = ssub.s32 1, %s3
  %s6 = scalar_select 0, %s5, %s3
  $region1: #{tpu_custom_call.1} parent=0
    #allocation3 [shape = 'u8[512]{0}', space=smem, size = 0x200, scoped, tag = 'output window, operand 0, single buffered']
    #allocation4 [shape = 's32[1]{0}', space=sflag, size = 0x4, scoped, tag = 'scoped memory for tpu_custom_call.1']
    %7 = vsyncpa [#allocation4], 0
    // Predicated region
    $region2: #{tpu_custom_call.1} parent=1 // pred_check
      _
    $region3: #{tpu_custom_call.1} parent=1 // pred_check_branch
      %9 = sbr.rel (0) target = $region5
    $region4: #{tpu_custom_call.1} parent=1 // pred_region
      %s10 = sadd.s32 0, 0
      %p11 = scmp.lt.s32.totalorder %s10, 0
      %s12 = scalar_select %p11, %s10, 0
      %p13 = scmp.lt.s32.totalorder %s12, 0
      %s14 = scalar_select %p13, %s12, 0
      %s15 = smul.addr %s14, 8
      %s16 = scalar_lea.vmem %s0, %s15
      %s17 = sadd.s32 0, 0
      %p18 = scmp.lt.s32.totalorder %s17, 0
      %s19 = scalar_select %p18, %s17, 0
    $region5: #{tpu_custom_call.1} parent=1 // pred_fallthru
      _
    // Predicated region
    $region6: #{tpu_custom_call.1} parent=1 // pred_check
      _
    $region7: #{tpu_custom_call.1} parent=1 // pred_check_branch
      %21 = sbr.rel (0) target = $region9
    $region8: #{tpu_custom_call.1} parent=1 // pred_region
      %s22 = sadd.s32 0, 0
      %p23 = scmp.lt.s32.totalorder %s22, 0
      %s24 = scalar_select %p23, %s22, 0
      %p25 = scmp.lt.s32.totalorder %s24, 0
      %s26 = scalar_select %p25, %s24, 0
      %s27 = smul.addr %s26, 8
      %s28 = scalar_lea.vmem %s1, %s27
      %s29 = sadd.s32 0, 0
      %p30 = scmp.lt.s32.totalorder %s29, 0
      %s31 = scalar_select %p30, %s29, 0
    $region9: #{tpu_custom_call.1} parent=1 // pred_fallthru
      _
    %s32 = sadd.s32 0, 0
    %p33 = scmp.lt.s32.totalorder %s32, 0
    %s34 = scalar_select %p33, %s32, 0
    %p35 = scmp.lt.s32.totalorder %s34, 0
    %s36 = scalar_select %p35, %s34, 0
    %s37 = smul.addr %s36, 8
    %s38 = scalar_lea.vmem %s0, %s37
    %s39 = sadd.s32 0, 0
    %p40 = scmp.lt.s32.totalorder %s39, 0
    %s41 = scalar_select %p40, %s39, 0
    %p42 = scmp.lt.s32.totalorder %s41, 0
    %s43 = scalar_select %p42, %s41, 0
    %s44 = smul.addr %s43, 8
    %s45 = scalar_lea.vmem %s1, %s44
    %s46 = sadd.s32 0, 0
    %p47 = scmp.lt.s32.totalorder %s46, 0
    %s48 = scalar_select %p47, %s46, 0
    %p49 = scmp.lt.s32.totalorder %s48, 0
    %s50 = scalar_select %p49, %s48, 0
    %s51 = smul.addr %s50, 8
    %s52 = scalar_lea.vmem %s0, %s51
    %s53 = sadd.s32 0, 0
    %p54 = scmp.lt.s32.totalorder %s53, 0
    %s55 = scalar_select %p54, %s53, 0
    %s56 = sadd.s32 0, 0
    %p57 = scmp.lt.s32.totalorder %s56, 0
    %s58 = scalar_select %p57, %s56, 0
    %p59 = scmp.lt.s32.totalorder %s58, 0
    %s60 = scalar_select %p59, %s58, 0
    %s61 = smul.addr %s60, 8
    %s62 = scalar_lea.vmem %s1, %s61
    %s63 = sadd.s32 0, 0
    %p64 = scmp.lt.s32.totalorder %s63, 0
    %s65 = scalar_select %p64, %s63, 0
    %p66 = scmp.eq.s32.totalorder 0, 0
    // Predicated region
    $region10: #{tpu_custom_call.1} parent=1 // pred_check
      %p67 = pneg %p66
    $region11: #{tpu_custom_call.1} parent=1 // pred_check_branch
      %69 = sbr.rel (%p67) target = $region13
    $region12: #{tpu_custom_call.1} parent=1 // pred_region
      %vm70 = vcmask 0
      %71 = vst.msk [vmem:[#allocation2] sm:$0x1] %vm70, 0.0
    $region13: #{tpu_custom_call.1} parent=1 // pred_fallthru
      _
    %v72 = vld [vmem:[%s52] sm:$0xff]
    %v73 = vld [vmem:[%s62] sm:$0xff]
    %vm74 = vcmask 261120
    %v75 = vsel %vm74, %v72, -inf
    %76 = vmax.xlane.f32.xlu0 %v75
    %v77 = vpop.xlane.xlu0 %76
    %v78 = vsub.f32 %v72, %v77
    %v79 = vmul.f32 %v78, 1.442695
    %v80 = vpow.pop %v79
    %v81 = vsel %vm74, %v80, 0.0
    %82 = vadd.xlane.f32.xlu0 %v81
    %v83 = vpop.xlane.xlu0 %82
    %v84 = vlaneseq
    %v85 = vand.u32 %v84, 127
    %86 = vset.pattern.permute.xlu0 0
    %87 = vperm.xlu0 %86, %v73
    %v88 = vpop.permute.xlu0 %87
    %vm89 = vcmp.eq.s32.totalorder %v85, %v88
    %v90 = vsel %vm89, %v78, 0.0
    %v91 = vsel %vm74, %v90, 0.0
    %92 = vadd.xlane.f32.xlu0 %v91
    %v93 = vpop.xlane.xlu0 %92
    %v94 = vlog2.pop %v83
    %v95 = vmul.f32 %v94, 0.6931472
    %v96 = vsub.f32 %v95, %v93
    %v97 = vsub.f32 0.0, %v96
    %v98 = vmul.f32 %v97, 1.442695
    %v99 = vpow.pop %v98
    %v100 = vsub.f32 1.0, %v99
    %v101 = vmul.f32 %v100, %v100
    %v102 = vmul.f32 %v101, %v96
    %s103 = sadd.s32 0, 0
    %s104 = smul.u32 %s103, 8
    %v105 = vlaneseq
    %v106 = vshrl.u32 %v105, 7
    %v107 = vstv %s104
    %v108 = vadd.s32 %v107, %v106
    %vm109 = vcmp.lt.s32.totalorder %v108, 8
    %v110 = vsel %vm109, %v102, 0.0
    %v111 = vld [vmem:[#allocation2] sm:$0x1]
    %vm112 = vcmask 7168
    %v113 = vsel %vm112, %v110, 0.0
    %114 = vadd.xlane.f32.xlu0 %v113
    %v115 = vpop.xlane.xlu0 %114
    %v116 = vrot.slane %v115, 4
    %v117 = vadd.f32 %v115, %v116
    %v118 = vrot.slane %v117, 2
    %v119 = vadd.f32 %v117, %v118
    %v120 = vrot.slane %v119, 1
    %v121 = vadd.f32 %v119, %v120
    %s122 = vtos %v121
    %v123 = vstv %s122
    %v124 = vadd.f32 %v111, %v123
    %vm125 = vcmask 0
    %126 = vst.msk [vmem:[#allocation2] sm:$0x1] %vm125, %v124
    // Predicated region
    $region14: #{tpu_custom_call.1} parent=1 // pred_check
      %p127 = pneg %p66
    $region15: #{tpu_custom_call.1} parent=1 // pred_check_branch
      %129 = sbr.rel (%p127) target = $region17
    $region16: #{tpu_custom_call.1} parent=1 // pred_region
      %v130 = vld [vmem:[#allocation2] sm:$0x1]
      %v131 = vadd.f32 %v130, 0.0
      %s132 = vtos %v131
      %s133 = scalar_lea.smem [#allocation3], 0
      %134 = sst [smem:[%s133]] %s132
    $region17: #{tpu_custom_call.1} parent=1 // pred_fallthru
      _
    // Predicated region
    $region18: #{tpu_custom_call.1} parent=1 // pred_check
      _
    $region19: #{tpu_custom_call.1} parent=1 // pred_check_branch
      %136 = sbr.rel (0) target = $region21
    $region20: #{tpu_custom_call.1} parent=1 // pred_region
      %s138 = ssub.s32 16, 16
      %139 = vsyncadd [#allocation4], %s138
      %142 = dma.smem_to_hbm [#allocation3], 16, %s2, [#allocation4]
    $region21: #{tpu_custom_call.1} parent=1 // pred_fallthru
      _
    // Predicated region
    $region22: #{tpu_custom_call.1} parent=1 // pred_check
      _
    $region23: #{tpu_custom_call.1} parent=1 // pred_check_branch
      %144 = sbr.rel (0) target = $region25
    $region24: #{tpu_custom_call.1} parent=1 // pred_region
      %145 = dma.done [#allocation4], 16
    $region25: #{tpu_custom_call.1} parent=1 // pred_fallthru
      _
    %146 = sfence
    %147 = vsyncpa [#allocation4], 1

</llo_original>
